<compile_context>
chip_gen: v7x
topology: tpu7x:2x2x1
jax: 0.10.0
libtpu: 0.0.40
codegen_flags: <defaults>
</compile_context>

<pallas_src>
import jax
import jax.numpy as jnp
from jax.experimental import pallas as pl
from jax.experimental.pallas import tpu as pltpu


def _pick_tile(dim, other_dim, itemsize, budget_bytes):
    """Largest lane-aligned (multiple-of-128) tile along `dim` whose weight block
    (other_dim x tile) stays under `budget_bytes`. Prefers exact divisors of `dim`;
    if none exists the caller zero-pads `dim` up to a multiple of the returned tile."""
    if dim <= 128:
        return dim
    max_t = max(128, (budget_bytes // max(1, other_dim * itemsize)) // 128 * 128)
    start = min((dim // 128) * 128, max_t)
    t = start
    while t >= 128:
        if dim % t == 0:
            return t
        t -= 128
    return start


def _linear1_relu_kernel(x_ref, w1_ref, b1_ref, h_ref, acc_ref):
    """h = relu(x @ W1 + b1), K-tiled with an f32 VMEM accumulator."""
    k = pl.program_id(0)

    @pl.when(k == 0)
    def _():
        acc_ref[...] = jnp.zeros_like(acc_ref)

    acc_ref[...] += jnp.dot(x_ref[...], w1_ref[...],
                            preferred_element_type=jnp.float32)

    @pl.when(k == pl.num_programs(0) - 1)
    def _():
        h_ref[...] = jnp.maximum(acc_ref[...] + b1_ref[...], 0.0).astype(h_ref.dtype)


def _linear2_kernel(h_ref, w2_ref, b2_ref, o_ref):
    """out tile = h @ W2[:, tile] + b2[tile] (bf16 weight streaming, f32 accum)."""
    out = jnp.dot(h_ref[...], w2_ref[...], preferred_element_type=jnp.float32)
    o_ref[...] = (out + b2_ref[...]).astype(o_ref.dtype)


def _linear2_q8_kernel(h_ref, w2q_ref, scale_ref, b2_ref, o_ref):
    """out tile = (h @ dequant(W2q[:, tile])) * scale[tile] + b2[tile].
    int8 -> bf16 dequant is VPU work fully hidden under the (halved) W2 DMA."""
    w = w2q_ref[...].astype(jnp.bfloat16)
    out = jnp.dot(h_ref[...], w, preferred_element_type=jnp.float32)
    o_ref[...] = (out * scale_ref[...] + b2_ref[...]).astype(o_ref.dtype)


def mapping_model_forward(x, w1, b1, w2, b2, *, max_length, output_dim,
                          stream_dtype=jnp.bfloat16, w2_mode="bf16",
                          out_dtype=None, tn=None):
    """x: (B, input_dim) -> (B, max_length, output_dim).

    w2_mode: "bf16" (default) streams W2 as bf16; "int8" streams W2 as int8 with
    per-output-column f32 scales (near-2x bandwidth win; slight precision change).
    """
    B, input_dim = x.shape
    hidden = w1.shape[1]                  # 2 * output_dim
    N = w2.shape[1]                       # output_dim * max_length
    assert hidden == 2 * output_dim
    assert N == output_dim * max_length
    out_dtype = x.dtype if out_dtype is None else out_dtype

    x_c = x.astype(stream_dtype)
    w1_c = w1.astype(stream_dtype)
    b1_2d = b1.reshape(1, hidden).astype(jnp.float32)
    b2_2d = b2.reshape(1, N).astype(jnp.float32)

    # ---------------- Stage 1: h = relu(x @ W1 + b1), K-tiled ----------------
    tk = _pick_tile(input_dim, hidden, x_c.dtype.itemsize, budget_bytes=8 << 20)
    k_pad = (-input_dim) % tk
    if k_pad:  # zero-padding along K is exact for the dot product
        x_c = jnp.pad(x_c, ((0, 0), (0, k_pad)))
        w1_c = jnp.pad(w1_c, ((0, k_pad), (0, 0)))
    K = input_dim + k_pad
    w1_tile_bytes = tk * hidden * w1_c.dtype.itemsize

    h = pl.pallas_call(
        _linear1_relu_kernel,
        out_shape=jax.ShapeDtypeStruct((B, hidden), stream_dtype),
        grid_spec=pltpu.PrefetchScalarGridSpec(
            num_scalar_prefetch=0,
            grid=(K // tk,),
            in_specs=[
                pl.BlockSpec((B, tk), lambda k: (0, k)),        # x K-slice
                pl.BlockSpec((tk, hidden), lambda k: (k, 0)),   # W1 K-slice
                pl.BlockSpec((1, hidden), lambda k: (0, 0)),    # b1
            ],
            out_specs=pl.BlockSpec((B, hidden), lambda k: (0, 0)),
            scratch_shapes=[pltpu.VMEM((B, hidden), jnp.float32)],
        ),
        compiler_params=pltpu.CompilerParams(
            dimension_semantics=("arbitrary",),   # reduction axis (accumulator)
            vmem_limit_bytes=int(min(48 << 20, 2 * w1_tile_bytes + (8 << 20))),
        ),
    )(x_c, w1_c, b1_2d)

    # ---------------- Stage 2: out = h @ W2 + b2, tiled over N ----------------
    if w2_mode == "int8":
        absmax = jnp.max(jnp.abs(w2.astype(jnp.float32)), axis=0, keepdims=True)
        scale = (jnp.maximum(absmax, 1e-12) / 127.0).astype(jnp.float32)    # (1, N)
        w2_c = jnp.clip(jnp.round(w2 / scale), -127.0, 127.0).astype(jnp.int8)
    else:
        scale = None
        w2_c = w2.astype(stream_dtype)

    if tn is None:
        # Large lane-dense column tile; cap so 2x-buffered W2 stays well under
        # v7x's 64 MiB/TC VMEM. Defaults: tn=3584 (bf16) / 7168 (int8) for N=78848.
        tn = _pick_tile(N, hidden, w2_c.dtype.itemsize, budget_bytes=15 << 20)
    n_pad = (-N) % tn
    if n_pad:  # robust fallback when N has no suitable divisor: pad + slice
        w2_c = jnp.pad(w2_c, ((0, 0), (0, n_pad)))
        b2_2d = jnp.pad(b2_2d, ((0, 0), (0, n_pad)))
        if scale is not None:
            scale = jnp.pad(scale, ((0, 0), (0, n_pad)), constant_values=1.0)
    Np = N + n_pad

    w2_tile_bytes = hidden * tn * w2_c.dtype.itemsize
    vmem_limit = int(min(48 << 20, max(24 << 20, 2 * w2_tile_bytes + (16 << 20))))

    flops = int(2 * B * hidden * Np)
    bytes_accessed = int(
        w2_c.size * w2_c.dtype.itemsize          # W2 stream (dominant)
        + h.size * h.dtype.itemsize              # hidden activations
        + b2_2d.size * 4                         # bias
        + (scale.size * 4 if scale is not None else 0)
        + B * Np * jnp.dtype(out_dtype).itemsize # output
    )

    if w2_mode == "int8":
        kernel = _linear2_q8_kernel
        in_specs = [
            pl.BlockSpec((B, hidden), lambda j: (0, 0)),    # h (grid-invariant, tiny)
            pl.BlockSpec((hidden, tn), lambda j: (0, j)),   # W2 int8 column tile
            pl.BlockSpec((1, tn), lambda j: (0, j)),        # per-column scales
            pl.BlockSpec((1, tn), lambda j: (0, j)),        # b2 column tile
        ]
        operands = (h, w2_c, scale, b2_2d)
    else:
        kernel = _linear2_kernel
        in_specs = [
            pl.BlockSpec((B, hidden), lambda j: (0, 0)),    # h (grid-invariant, tiny)
            pl.BlockSpec((hidden, tn), lambda j: (0, j)),   # W2 column tile (streamed)
            pl.BlockSpec((1, tn), lambda j: (0, j)),        # b2 column tile
        ]
        operands = (h, w2_c, b2_2d)

    out_flat = pl.pallas_call(
        kernel,
        out_shape=jax.ShapeDtypeStruct((B, Np), out_dtype),
        grid_spec=pltpu.PrefetchScalarGridSpec(
            num_scalar_prefetch=0,
            grid=(Np // tn,),
            in_specs=in_specs,
            out_specs=pl.BlockSpec((B, tn), lambda j: (0, j)),
        ),
        compiler_params=pltpu.CompilerParams(
            # No cross-iteration state -> safe to shard across TensorCores (v7x).
            dimension_semantics=("parallel",),
            vmem_limit_bytes=vmem_limit,
        ),
        cost_estimate=pl.CostEstimate(
            flops=flops, transcendentals=0, bytes_accessed=bytes_accessed),
    )(*operands)

    if n_pad:
        out_flat = out_flat[:, :N]
    return out_flat.reshape(-1, max_length, output_dim)


if __name__ == "__main__":
    # Small shapes consistent with the module structure
    # (module defaults are input_dim=1024, output_dim=1024, max_length=77).
    B = 4
    input_dim = 256
    output_dim = 128
    max_length = 16
    hidden = output_dim * 2               # 256
    N = output_dim * max_length           # 2048

    key = jax.random.PRNGKey(0)
    kx, kw1, kb1, kw2, kb2 = jax.random.split(key, 5)

    x = jax.random.normal(kx, (B, input_dim), dtype=jnp.float32)
    # nn.Linear-shaped params stored transposed: (in_features, out_features).
    w1 = jax.random.normal(kw1, (input_dim, hidden), dtype=jnp.float32) * 0.02
    b1 = jax.random.normal(kb1, (hidden,), dtype=jnp.float32) * 0.02
    w2 = jax.random.normal(kw2, (hidden, N), dtype=jnp.float32) * 0.02
    b2 = jax.random.normal(kb2, (N,), dtype=jnp.float32) * 0.02

    # --- Default bf16-streaming path ---
    out = mapping_model_forward(
        x, w1, b1, w2, b2, max_length=max_length, output_dim=output_dim)
    out = jax.block_until_ready(out)
    assert out.shape == (B, max_length, output_dim), out.shape

    # Strict check vs a reference using the same bf16-streaming precision.
    bf16 = jnp.bfloat16
    h_ref = jnp.maximum(
        jnp.dot(x.astype(bf16), w1.astype(bf16),
                preferred_element_type=jnp.float32) + b1, 0.0).astype(bf16)
    ref_bf16 = (jnp.dot(h_ref, w2.astype(bf16), preferred_element_type=jnp.float32)
                + b2).reshape(-1, max_length, output_dim)
    assert jnp.allclose(out, ref_bf16, atol=1e-4, rtol=1e-4), "mismatch vs bf16 reference"

    # Loose sanity check vs the full-f32 (PyTorch-equivalent) reference.
    ref_f32 = (jnp.maximum(x @ w1 + b1, 0.0) @ w2 + b2
               ).reshape(-1, max_length, output_dim)
    assert jnp.allclose(out, ref_f32, atol=5e-2, rtol=5e-2), "mismatch vs f32 reference"

    # --- int8 W2-streaming path (biggest HBM-bandwidth lever at real shapes) ---
    out_q = mapping_model_forward(
        x, w1, b1, w2, b2, max_length=max_length, output_dim=output_dim,
        w2_mode="int8")
    out_q = jax.block_until_ready(out_q)
    assert out_q.shape == (B, max_length, output_dim), out_q.shape
    assert jnp.allclose(out_q, ref_f32, atol=5e-2, rtol=5e-2), "int8 mismatch vs f32 reference"

    print("KERNEL_OK")
</pallas_src>

<mosaic_0001>
module attributes {stable_mosaic.version = 11 : i64} {
  func.func @_linear1_relu_kernel(%arg0: i32, %arg1: memref<4x256xbf16, #tpu.memory_space<vmem>>, %arg2: memref<256x256xbf16, #tpu.memory_space<vmem>>, %arg3: memref<1x256xf32, #tpu.memory_space<vmem>>, %arg4: memref<4x256xbf16, #tpu.memory_space<vmem>>, %arg5: memref<4x256xf32, #tpu.memory_space<vmem>>) attributes {dimension_semantics = [#tpu.dimension_semantics<arbitrary>], iteration_bounds = array<i64: 1>, scalar_prefetch = 0 : i64, scratch_operands = 1 : i64, tpu.core_type = #tpu.core_type<tc>, window_params = [{transform_indices = @transform_0, window_bounds = array<i64: 4, 256>}, {transform_indices = @transform_1, window_bounds = array<i64: 256, 256>}, {pipeline_mode = #tpu.pipeline_mode<synchronous>, transform_indices = @transform_2, window_bounds = array<i64: 1, 256>}, {pipeline_mode = #tpu.pipeline_mode<synchronous>, transform_indices = @transform_3, window_bounds = array<i64: 4, 256>}]} {
    %c0_i32 = arith.constant 0 : i32
    %0 = arith.cmpi eq, %arg0, %c0_i32 : i32
    %1 = arith.extui %0 : i1 to i32
    %c0_i32_0 = arith.constant 0 : i32
    %2 = arith.cmpi ne, %1, %c0_i32_0 : i32
    scf.if %2 {
      %cst_10 = arith.constant 0.000000e+00 : f32
      %12 = vector.broadcast %cst_10 : f32 to vector<4x256xf32>
      %c0_11 = arith.constant 0 : index
      %c0_12 = arith.constant 0 : index
      %13 = vector.load %arg5[%c0_11, %c0_12] : memref<4x256xf32, #tpu.memory_space<vmem>>, vector<4x256xf32>
      tpu.vector_store %arg5[%c0_11, %c0_12], %12 {strides = array<i32>} : memref<4x256xf32, #tpu.memory_space<vmem>>, vector<4x256xf32>,
    } else {
    }
    %c0 = arith.constant 0 : index
    %c0_1 = arith.constant 0 : index
    %3 = vector.load %arg5[%c0, %c0_1] : memref<4x256xf32, #tpu.memory_space<vmem>>, vector<4x256xf32>
    %c0_2 = arith.constant 0 : index
    %c0_3 = arith.constant 0 : index
    %4 = vector.load %arg1[%c0_2, %c0_3] : memref<4x256xbf16, #tpu.memory_space<vmem>>, vector<4x256xbf16>
    %c0_4 = arith.constant 0 : index
    %c0_5 = arith.constant 0 : index
    %5 = vector.load %arg2[%c0_4, %c0_5] : memref<256x256xbf16, #tpu.memory_space<vmem>>, vector<256x256xbf16>
    %cst = arith.constant dense<0.000000e+00> : vector<4x256xf32>
    %6 = tpu.matmul %4, %5, %cst {dimension_numbers = #tpu.dot_dimension_numbers<[1], [0], [0], [1], [0, 0, 1, 1], [], []>} : vector<4x256xbf16>, vector<256x256xbf16>, vector<4x256xf32> -> vector<4x256xf32>
    %7 = arith.addf %3, %6 : vector<4x256xf32>
    %c0_6 = arith.constant 0 : index
    %c0_7 = arith.constant 0 : index
    %8 = vector.load %arg5[%c0_6, %c0_7] : memref<4x256xf32, #tpu.memory_space<vmem>>, vector<4x256xf32>
    tpu.vector_store %arg5[%c0_6, %c0_7], %7 {strides = array<i32>} : memref<4x256xf32, #tpu.memory_space<vmem>>, vector<4x256xf32>,
    %c0_i32_8 = arith.constant 0 : i32
    %9 = arith.cmpi eq, %arg0, %c0_i32_8 : i32
    %10 = arith.extui %9 : i1 to i32
    %c0_i32_9 = arith.constant 0 : i32
    %11 = arith.cmpi ne, %10, %c0_i32_9 : i32
    scf.if %11 {
      %c0_10 = arith.constant 0 : index
      %c0_11 = arith.constant 0 : index
      %12 = vector.load %arg5[%c0_10, %c0_11] : memref<4x256xf32, #tpu.memory_space<vmem>>, vector<4x256xf32>
      %c0_12 = arith.constant 0 : index
      %c0_13 = arith.constant 0 : index
      %13 = vector.load %arg3[%c0_12, %c0_13] : memref<1x256xf32, #tpu.memory_space<vmem>>, vector<1x256xf32>
      %14 = vector.broadcast %13 : vector<1x256xf32> to vector<4x256xf32>
      %15 = arith.addf %12, %14 : vector<4x256xf32>
      %cst_14 = arith.constant 0.000000e+00 : f32
      %16 = vector.broadcast %cst_14 : f32 to vector<4x256xf32>
      %17 = arith.maximumf %15, %16 : vector<4x256xf32>
      %18 = arith.truncf %17 : vector<4x256xf32> to vector<4x256xbf16>
      %c0_15 = arith.constant 0 : index
      %c0_16 = arith.constant 0 : index
      %19 = vector.load %arg4[%c0_15, %c0_16] : memref<4x256xbf16, #tpu.memory_space<vmem>>, vector<4x256xbf16>
      tpu.vector_store %arg4[%c0_15, %c0_16], %18 {strides = array<i32>} : memref<4x256xbf16, #tpu.memory_space<vmem>>, vector<4x256xbf16>,
    } else {
    }
    return
  }
  func.func @transform_0(%arg0: i32) -> (i32, i32) {
    %c0_i32 = arith.constant 0 : i32
    %c0_i32_0 = arith.constant 0 : i32
    return %c0_i32, %arg0 : i32, i32
  }
  func.func @transform_1(%arg0: i32) -> (i32, i32) {
    %c0_i32 = arith.constant 0 : i32
    %c0_i32_0 = arith.constant 0 : i32
    return %arg0, %c0_i32 : i32, i32
  }
  func.func @transform_2(%arg0: i32) -> (i32, i32) {
    %c0_i32 = arith.constant 0 : i32
    %c0_i32_0 = arith.constant 0 : i32
    %c0_i32_1 = arith.constant 0 : i32
    return %c0_i32, %c0_i32_0 : i32, i32
  }
  func.func @transform_3(%arg0: i32) -> (i32, i32) {
    %c0_i32 = arith.constant 0 : i32
    %c0_i32_0 = arith.constant 0 : i32
    %c0_i32_1 = arith.constant 0 : i32
    return %c0_i32, %c0_i32_0 : i32, i32
  }
}

</mosaic_0001>

<llo_original>
// kernel: tpu_custom_call.1
$region0: #{tpu_custom_call.1}
  #allocation0 [shape = 'u32[]', space=smem, size = 0x4, offset = 0x4, fixed_abs, tag = 'smem constant byte address 0x4 - core index']
  #allocation1 [shape = 'u32[144,128]{1,0:T(1,128)}', space=vmem, size = 0x12000, scoped, tag = 'internal scratch']
  #allocation2 [shape = 'f32[4,256]{1,0:T(4,128)}', space=vmem, size = 0x1000, scoped, tag = 'scratch operand']
  %s0 = inlined_call_operand.hbm [shape: bf16[4,256], index: 0, kind: input, shape index: {}]
  %s1 = inlined_call_operand.hbm [shape: bf16[256,256], index: 1, kind: input, shape index: {}]
  %s2 = inlined_call_operand.vmem [shape: f32[1,256], index: 2, kind: input, shape index: {}]
  %s3 = inlined_call_operand.hbm [shape: bf16[4,256], index: 3, kind: output, shape index: {}]
  %s4 = sld [smem:[#allocation0]]
  $region38: #{tpu_custom_call.1} parent=0
    _
  %s6 = ssub.s32 1, %s4
  %s7 = scalar_select 0, %s6, %s4
  $region1: #{tpu_custom_call.1} parent=0
    #allocation3 [shape = 'u8[2048]{0}', space=vmem, size = 0x800, scoped, tag = 'input window, operand 0, single buffered']
    #allocation4 [shape = 's32[1]{0}', space=sflag, size = 0x4, scoped, tag = 'scoped memory for tpu_custom_call.1']
    #allocation5 [shape = 's32[1]{0}', space=sflag, size = 0x4, scoped, tag = 'scoped memory for tpu_custom_call.1']
    #allocation6 [shape = 'u8[131072]{0}', space=vmem, size = 0x20000, scoped, tag = 'input window, operand 1, single buffered']
    #allocation7 [shape = 's32[1]{0}', space=sflag, size = 0x4, scoped, tag = 'scoped memory for tpu_custom_call.1']
    #allocation8 [shape = 'u8[2048]{0}', space=vmem, size = 0x800, scoped, tag = 'output window, operand 0, single buffered']
    %8 = vsyncpa [#allocation4], 0
    %9 = vsyncpa [#allocation7], 0
    %10 = vsyncpa [#allocation5], 0
    // Predicated region
    $region2: #{tpu_custom_call.1} parent=1 // pred_check
      _
    $region3: #{tpu_custom_call.1} parent=1 // pred_check_branch
      %12 = sbr.rel (0) target = $region5
    $region4: #{tpu_custom_call.1} parent=1 // pred_region
      %s14 = ssub.s32 64, 64
      %15 = vsyncadd [#allocation4], %s14
      %s17 = sshll.u32 [#allocation3], 4
      %s18 = int_to_ptr.vmem [resolvable:$true] %s17
      %20 = dma.hbm_to_vmem [thread:$0]  %s0, 64, %s18, [#allocation4]
    $region5: #{tpu_custom_call.1} parent=1 // pred_fallthru
      _
    // Predicated region
    $region6: #{tpu_custom_call.1} parent=1 // pred_check
      _
    $region7: #{tpu_custom_call.1} parent=1 // pred_check_branch
      %22 = sbr.rel (0) target = $region9
    $region8: #{tpu_custom_call.1} parent=1 // pred_region
      %s24 = ssub.s32 4096, 4096
      %25 = vsyncadd [#allocation7], %s24
      %s26 = sshll.u32 [#allocation6], 4
      %s27 = int_to_ptr.vmem [resolvable:$true] %s26
      %32 = dma.hbm_to_vmem [thread:$0]  %s1, 4096, %s27, [#allocation7], 128, 128, 8
    $region9: #{tpu_custom_call.1} parent=1 // pred_fallthru
      _
    // Predicated region
    $region10: #{tpu_custom_call.1} parent=1 // pred_check
      _
    $region11: #{tpu_custom_call.1} parent=1 // pred_check_branch
      %34 = sbr.rel (0) target = $region13
    $region12: #{tpu_custom_call.1} parent=1 // pred_region
      _
    $region13: #{tpu_custom_call.1} parent=1 // pred_fallthru
      _
    // Predicated region
    $region14: #{tpu_custom_call.1} parent=1 // pred_check
      _
    $region15: #{tpu_custom_call.1} parent=1 // pred_check_branch
      %36 = sbr.rel (0) target = $region17
    $region16: #{tpu_custom_call.1} parent=1 // pred_region
      %37 = dma.done [#allocation4], 64
    $region17: #{tpu_custom_call.1} parent=1 // pred_fallthru
      _
    // Predicated region
    $region18: #{tpu_custom_call.1} parent=1 // pred_check
      _
    $region19: #{tpu_custom_call.1} parent=1 // pred_check_branch
      %39 = sbr.rel (0) target = $region21
    $region20: #{tpu_custom_call.1} parent=1 // pred_region
      %40 = dma.done [#allocation7], 4096
    $region21: #{tpu_custom_call.1} parent=1 // pred_fallthru
      _
    %p41 = scmp.eq.s32.totalorder 0, 0
    // Predicated region
    $region22: #{tpu_custom_call.1} parent=1 // pred_check
      %p42 = pneg %p41
    $region23: #{tpu_custom_call.1} parent=1 // pred_check_branch
      %44 = sbr.rel (%p42) target = $region25
    $region24: #{tpu_custom_call.1} parent=1 // pred_region
      %45 = vst [vmem:[#allocation2] sm:$0xff] 0.0
    $region25: #{tpu_custom_call.1} parent=1 // pred_fallthru
      _
    %v46 = vld [vmem:[#allocation2] sm:$0xff]
    %v47 = vld [vmem:[#allocation3] sm:$0xf]
    %v48 = vld [vmem:[#allocation6] sm:$0xff]
    %v49 = vld [vmem:[#allocation6 + $0x8] sm:$0xff]
    %v50 = vld [vmem:[#allocation6 + $0x10] sm:$0xff]
    %v51 = vld [vmem:[#allocation6 + $0x18] sm:$0xff]
    %v52 = vld [vmem:[#allocation6 + $0x20] sm:$0xff]
    %v53 = vld [vmem:[#allocation6 + $0x28] sm:$0xff]
    %v54 = vld [vmem:[#allocation6 + $0x30] sm:$0xff]
    %v55 = vld [vmem:[#allocation6 + $0x38] sm:$0xff]
    %v56 = vld [vmem:[#allocation6 + $0x40] sm:$0xff]
    %v57 = vld [vmem:[#allocation6 + $0x48] sm:$0xff]
    %v58 = vld [vmem:[#allocation6 + $0x50] sm:$0xff]
    %v59 = vld [vmem:[#allocation6 + $0x58] sm:$0xff]
    %v60 = vld [vmem:[#allocation6 + $0x60] sm:$0xff]
    %v61 = vld [vmem:[#allocation6 + $0x68] sm:$0xff]
    %v62 = vld [vmem:[#allocation6 + $0x70] sm:$0xff]
    %v63 = vld [vmem:[#allocation6 + $0x78] sm:$0xff]
    %v64 = vld [vmem:[#allocation6 + $0x80] sm:$0xff]
    %v65 = vld [vmem:[#allocation6 + $0x88] sm:$0xff]
    %v66 = vld [vmem:[#allocation6 + $0x90] sm:$0xff]
    %v67 = vld [vmem:[#allocation6 + $0x98] sm:$0xff]
    %v68 = vld [vmem:[#allocation6 + $0xa0] sm:$0xff]
    %v69 = vld [vmem:[#allocation6 + $0xa8] sm:$0xff]
    %v70 = vld [vmem:[#allocation6 + $0xb0] sm:$0xff]
    %v71 = vld [vmem:[#allocation6 + $0xb8] sm:$0xff]
    %v72 = vld [vmem:[#allocation6 + $0xc0] sm:$0xff]
    %v73 = vld [vmem:[#allocation6 + $0xc8] sm:$0xff]
    %v74 = vld [vmem:[#allocation6 + $0xd0] sm:$0xff]
    %v75 = vld [vmem:[#allocation6 + $0xd8] sm:$0xff]
    %v76 = vld [vmem:[#allocation6 + $0xe0] sm:$0xff]
    %v77 = vld [vmem:[#allocation6 + $0xe8] sm:$0xff]
    %v78 = vld [vmem:[#allocation6 + $0xf0] sm:$0xff]
    %v79 = vld [vmem:[#allocation6 + $0xf8] sm:$0xff]
    %v82 = vunpack.c.l.s4 1983009808
    %v83 = vunpack.c.0.s8 %v82
    %v84 = vlaneseq
    %v85 = vshrl.u32 %v84, 7
    %v86 = vsub.s32 %v83, %v85
    %v87 = vrot.slane %v47, %v86
    %v88 = vcombine.high %v87, %v87
    %v123 = vunpack.c.l.b16 %v48
    %v124 = vunpack.c.h.b16 %v48
    %v125 = vunpack.c.l.b16 %v49
    %v126 = vunpack.c.h.b16 %v49
    %v127 = vunpack.c.l.b16 %v50
    %v128 = vunpack.c.h.b16 %v50
    %v129 = vunpack.c.l.b16 %v51
    %v130 = vunpack.c.h.b16 %v51
    %v131 = vunpack.c.l.b16 %v52
    %v132 = vunpack.c.h.b16 %v52
    %v133 = vunpack.c.l.b16 %v53
    %v134 = vunpack.c.h.b16 %v53
    %v135 = vunpack.c.l.b16 %v54
    %v136 = vunpack.c.h.b16 %v54
    %v137 = vunpack.c.l.b16 %v55
    %v138 = vunpack.c.h.b16 %v55
    %v139 = vunpack.c.l.b16 %v56
    %v140 = vunpack.c.h.b16 %v56
    %v141 = vunpack.c.l.b16 %v57
    %v142 = vunpack.c.h.b16 %v57
    %v143 = vunpack.c.l.b16 %v58
    %v144 = vunpack.c.h.b16 %v58
    %v145 = vunpack.c.l.b16 %v59
    %v146 = vunpack.c.h.b16 %v59
    %v147 = vunpack.c.l.b16 %v60
    %v148 = vunpack.c.h.b16 %v60
    %v149 = vunpack.c.l.b16 %v61
    %v150 = vunpack.c.h.b16 %v61
    %v151 = vunpack.c.l.b16 %v62
    %v152 = vunpack.c.h.b16 %v62
    %v153 = vunpack.c.l.b16 %v63
    %v154 = vunpack.c.h.b16 %v63
    %v155 = vunpack.c.l.b16 %v64
    %v156 = vunpack.c.h.b16 %v64
    %v157 = vunpack.c.l.b16 %v65
    %v158 = vunpack.c.h.b16 %v65
    %v159 = vunpack.c.l.b16 %v66
    %v160 = vunpack.c.h.b16 %v66
    %v161 = vunpack.c.l.b16 %v67
    %v162 = vunpack.c.h.b16 %v67
    %v163 = vunpack.c.l.b16 %v68
    %v164 = vunpack.c.h.b16 %v68
    %v165 = vunpack.c.l.b16 %v69
    %v166 = vunpack.c.h.b16 %v69
    %v167 = vunpack.c.l.b16 %v70
    %v168 = vunpack.c.h.b16 %v70
    %v169 = vunpack.c.l.b16 %v71
    %v170 = vunpack.c.h.b16 %v71
    %v171 = vunpack.c.l.b16 %v72
    %v172 = vunpack.c.h.b16 %v72
    %v173 = vunpack.c.l.b16 %v73
    %v174 = vunpack.c.h.b16 %v73
    %v175 = vunpack.c.l.b16 %v74
    %v176 = vunpack.c.h.b16 %v74
    %v177 = vunpack.c.l.b16 %v75
    %v178 = vunpack.c.h.b16 %v75
    %v179 = vunpack.c.l.b16 %v76
    %v180 = vunpack.c.h.b16 %v76
    %v181 = vunpack.c.l.b16 %v77
    %v182 = vunpack.c.h.b16 %v77
    %v183 = vunpack.c.l.b16 %v78
    %v184 = vunpack.c.h.b16 %v78
    %v185 = vunpack.c.l.b16 %v79
    %v186 = vunpack.c.h.b16 %v79
    %v187 = vpack.c.b16 %v125, %v123
    %v188 = vpack.c.b16 %v126, %v124
    %v189 = vpack.c.b16 %v129, %v127
    %v190 = vpack.c.b16 %v130, %v128
    %v191 = vpack.c.b16 %v133, %v131
    %v192 = vpack.c.b16 %v134, %v132
    %v193 = vpack.c.b16 %v137, %v135
    %v194 = vpack.c.b16 %v138, %v136
    %v195 = vpack.c.b16 %v141, %v139
    %v196 = vpack.c.b16 %v142, %v140
    %v197 = vpack.c.b16 %v145, %v143
    %v198 = vpack.c.b16 %v146, %v144
    %v199 = vpack.c.b16 %v149, %v147
    %v200 = vpack.c.b16 %v150, %v148
    %v201 = vpack.c.b16 %v153, %v151
    %v202 = vpack.c.b16 %v154, %v152
    %v203 = vpack.c.b16 %v157, %v155
    %v204 = vpack.c.b16 %v158, %v156
    %v205 = vpack.c.b16 %v161, %v159
    %v206 = vpack.c.b16 %v162, %v160
    %v207 = vpack.c.b16 %v165, %v163
    %v208 = vpack.c.b16 %v166, %v164
    %v209 = vpack.c.b16 %v169, %v167
    %v210 = vpack.c.b16 %v170, %v168
    %v211 = vpack.c.b16 %v173, %v171
    %v212 = vpack.c.b16 %v174, %v172
    %v213 = vpack.c.b16 %v177, %v175
    %v214 = vpack.c.b16 %v178, %v176
    %v215 = vpack.c.b16 %v181, %v179
    %v216 = vpack.c.b16 %v182, %v180
    %v217 = vpack.c.b16 %v185, %v183
    %v218 = vpack.c.b16 %v186, %v184
    %251 = vmatprep.subr.bf16.mxu0 %v188
    %252 = vmatpush1.bf16.msra.mxu0 %v187
    %253 = vmatprep.subr.bf16.mxu0 %v190
    %254 = vmatpush1.bf16.msra.mxu0 %v189
    %255 = vmatprep.subr.bf16.mxu0 %v192
    %256 = vmatpush1.bf16.msra.mxu0 %v191
    %257 = vmatprep.subr.bf16.mxu0 %v194
    %258 = vmatpush1.bf16.msra.mxu0 %v193
    %259 = vmatprep.subr.bf16.mxu0 %v196
    %260 = vmatpush1.bf16.msra.mxu0 %v195
    %261 = vmatprep.subr.bf16.mxu0 %v198
    %262 = vmatpush1.bf16.msra.mxu0 %v197
    %263 = vmatprep.subr.bf16.mxu0 %v200
    %264 = vmatpush1.bf16.msra.mxu0 %v199
    %265 = vmatprep.subr.bf16.mxu0 %v202
    %266 = vmatpush1.bf16.msra.mxu0 %v201
    %267 = vmatprep.subr.bf16.mxu0 %v204
    %268 = vmatpush1.bf16.msra.mxu0 %v203
    %269 = vmatprep.subr.bf16.mxu0 %v206
    %270 = vmatpush1.bf16.msra.mxu0 %v205
    %271 = vmatprep.subr.bf16.mxu0 %v208
    %272 = vmatpush1.bf16.msra.mxu0 %v207
    %273 = vmatprep.subr.bf16.mxu0 %v210
    %274 = vmatpush1.bf16.msra.mxu0 %v209
    %275 = vmatprep.subr.bf16.mxu0 %v212
    %276 = vmatpush1.bf16.msra.mxu0 %v211
    %277 = vmatprep.subr.bf16.mxu0 %v214
    %278 = vmatpush1.bf16.msra.mxu0 %v213
    %279 = vmatprep.subr.bf16.mxu0 %v216
    %280 = vmatpush1.bf16.msra.mxu0 %v215
    %281 = vmatprep.subr.bf16.mxu0 %v218
    %282 = vmatpush1.bf16.msra.mxu0 %v217
    %283 = vmatprep.mubr.bf16.mxu0 %v88
    %284 = vmatmul.mubr.bf16.gmra.mrb[0].mxu0 %v87
    %v285 = vpop.f32.mrb[0].mxu0
    %v286 = vadd.f32 0.0, %v285
    %v287 = vpop.f32.mrb[0].mxu0
    %v288 = vadd.f32 0.0, %v287
    %v289 = vpop.f32.mrb[0].mxu0
    %v290 = vpop.f32.mrb[0].mxu0
    %291 = vdwg.mxu0
    %v294 = vcombine.low %v286, %v288
    %v296 = vadd.f32 %v46, %v294
    %297 = vst [vmem:[#allocation2] sm:$0xff] %v296
    // Predicated region
    $region26: #{tpu_custom_call.1} parent=1 // pred_check
      %p298 = pneg %p41
    $region27: #{tpu_custom_call.1} parent=1 // pred_check_branch
      %300 = sbr.rel (%p298) target = $region29
    $region28: #{tpu_custom_call.1} parent=1 // pred_region
      %v301 = vld [vmem:[#allocation2] sm:$0xff]
      %v302 = vld [vmem:[%s2] sm:$0x3]
      %v304 = vlaneseq
      %v305 = vshrl.u32 %v304, 7
      %v306 = vsub.s32 0, %v305
      %v307 = vrot.slane %v302, %v306
      %v308 = vlaneseq
      %v309 = vshrl.u32 %v308, 7
      %v310 = vsub.s32 1, %v309
      %v311 = vrot.slane %v302, %v310
      %v312 = vcombine.low %v307, %v311
      %v314 = vadd.f32 %v301, %v312
      %v315 = vmax.f32 %v314, 0.0
      %v317 = vcombine.high %v315, %v315
      %v319 = vpack.c.bf16 %v315, %v315
      %v320 = vpack.c.bf16 %v317, %v317
      %v323 = vcombine.low %v319, %v320
      %v325 = vunpack.c.l.s4 1983009808
      %v326 = vunpack.c.0.s8 %v325
      %v327 = vlaneseq
      %v328 = vshrl.u32 %v327, 7
      %v329 = vsub.s32 %v326, %v328
      %v330 = vrot.slane %v323, %v329
      %332 = vst [vmem:[#allocation8] sm:$0xf] %v330
    $region29: #{tpu_custom_call.1} parent=1 // pred_fallthru
      _
    // Predicated region
    $region30: #{tpu_custom_call.1} parent=1 // pred_check
      _
    $region31: #{tpu_custom_call.1} parent=1 // pred_check_branch
      %334 = sbr.rel (0) target = $region33
    $region32: #{tpu_custom_call.1} parent=1 // pred_region
      %s336 = ssub.s32 64, 64
      %337 = vsyncadd [#allocation5], %s336
      %s339 = sshll.u32 [#allocation8], 4
      %s340 = int_to_ptr.vmem [resolvable:$true] %s339
      %342 = dma.vmem_to_hbm [thread:$0]  %s340, 64, %s3, [#allocation5]
    $region33: #{tpu_custom_call.1} parent=1 // pred_fallthru
      _
    // Predicated region
    $region34: #{tpu_custom_call.1} parent=1 // pred_check
      _
    $region35: #{tpu_custom_call.1} parent=1 // pred_check_branch
      %344 = sbr.rel (0) target = $region37
    $region36: #{tpu_custom_call.1} parent=1 // pred_region
      %345 = dma.done [#allocation5], 64
    $region37: #{tpu_custom_call.1} parent=1 // pred_fallthru
      _
    %346 = vsyncpa [#allocation4], 1
    %347 = vsyncpa [#allocation7], 1
    %348 = vsyncpa [#allocation5], 1

</llo_original>
